<compile_context>
chip_gen: v7x
topology: tpu7x:2x2x1
jax: 0.10.0
libtpu: 0.0.40
codegen_flags: <defaults>
</compile_context>

<pallas_src>
import jax
import jax.numpy as jnp
from jax.experimental import pallas as pl
from jax.experimental.pallas import tpu as pltpu

GAMMA = 0.2
_LANES = 128            # lane width (fast axis)
_SUBLANES = 8
_MAX_BLOCK_ROWS = 8192  # 8192 * 128 * 4 B = 4 MiB f32 per block (8 MiB 2x-buf)
_FAST_PATH_ELEMS = 1 << 18  # < ~1 MiB f32: fused XLA reduce beats kernel launch


def _round_up(x, m):
    return ((x + m - 1) // m) * m


def _make_minmax_kernel(block_rows, rows_in_last_block):
    """Per-block (8,128)-shaped partial min/max over a (block_rows, 128) tile."""
    groups = block_rows // _SUBLANES
    last_block_partial = rows_in_last_block != block_rows

    def kernel(x_ref, out_ref):
        tile = x_ref[...]                      # (block_rows, 128), native dtype

        def emit(tile_min, tile_max):
            # (groups, 8, 128) view is layout-identity; the axis-0 reduce is a
            # pure vreg-to-vreg VPU min/max (no per-block XLU sublane reduce).
            pmin = jnp.min(tile_min.reshape(groups, _SUBLANES, _LANES), axis=0)
            pmax = jnp.max(tile_max.reshape(groups, _SUBLANES, _LANES), axis=0)
            out_ref[0, 0] = pmin.astype(jnp.float32)
            out_ref[0, 1] = pmax.astype(jnp.float32)

        if last_block_partial:
            pid = pl.program_id(0)
            last = pl.num_programs(0) - 1

            @pl.when(pid == last)
            def _():
                # Only the last block overhangs the array; mask the undefined
                # out-of-bounds rows with +/-inf (Pallas does not bounds-check
                # VMEM block reads).
                row_ids = jax.lax.broadcasted_iota(jnp.int32, tile.shape, 0)
                valid = row_ids < rows_in_last_block
                pos_inf = jnp.array(jnp.inf, dtype=tile.dtype)
                neg_inf = jnp.array(-jnp.inf, dtype=tile.dtype)
                emit(jnp.where(valid, tile, pos_inf),
                     jnp.where(valid, tile, neg_inf))

            @pl.when(pid != last)
            def _():
                emit(tile, tile)
        else:
            emit(tile, tile)

    return kernel


def _pallas_minmax(x):
    """Global (min, max) of a lane-aligned (rows, 128) float array, in f32."""
    rows = x.shape[0]

    # Big blocks to amortize per-grid-step overhead, capped at ~rows/2 so there
    # are always >= 2 blocks for the "parallel" grid (v7x dual-TC split).
    block_rows = min(_MAX_BLOCK_ROWS, _round_up(pl.cdiv(rows, 2), _SUBLANES))
    num_blocks = pl.cdiv(rows, block_rows)
    rows_in_last_block = rows - (num_blocks - 1) * block_rows

    kernel = _make_minmax_kernel(block_rows, rows_in_last_block)

    itemsize = jnp.dtype(x.dtype).itemsize
    cost = pl.CostEstimate(
        flops=2 * rows * _LANES,
        transcendentals=0,
        bytes_accessed=rows * _LANES * itemsize
        + num_blocks * 2 * _SUBLANES * _LANES * 4,
    )

    parts = pl.pallas_call(
        kernel,
        out_shape=jax.ShapeDtypeStruct(
            (num_blocks, 2, _SUBLANES, _LANES), jnp.float32),
        grid_spec=pltpu.PrefetchScalarGridSpec(
            num_scalar_prefetch=0,
            grid=(num_blocks,),
            in_specs=[pl.BlockSpec((block_rows, _LANES), lambda k: (k, 0))],
            out_specs=pl.BlockSpec((1, 2, _SUBLANES, _LANES),
                                   lambda k: (k, 0, 0, 0)),
        ),
        compiler_params=pltpu.CompilerParams(
            dimension_semantics=("parallel",)),
        cost_estimate=cost,
    )(x)

    # Tiny epilogue on (num_blocks, 8, 128) partials.
    gmin = jnp.min(parts[:, 0])
    gmax = jnp.max(parts[:, 1])
    return gmin, gmax


def attention_loss(attention, label, gamma=GAMMA, *,
                   min_pallas_elems=_FAST_PATH_ELEMS):
    """Pallas implementation of AttentionLoss.forward.

    attention: any-shape float array (streamed in its native dtype).
    label: scalar (python float or 0-d / 1-element array).
    gamma: python float.
    Returns (total_loss, (inc_loss, exc_loss)) as f32 scalars.
    """
    flat = jnp.ravel(attention)          # free reshape, no dtype cast
    n = flat.shape[0]
    rem = n % _LANES
    rows = (n - rem) // _LANES

    if n < min_pallas_elems or rows < 2 * _SUBLANES:
        # Fast path: launch/grid overhead dwarfs streaming time for tiny
        # inputs; let XLA fuse the whole reduction.
        gmin = jnp.min(flat).astype(jnp.float32)
        gmax = jnp.max(flat).astype(jnp.float32)
    else:
        x = flat[: rows * _LANES].reshape(rows, _LANES)  # pure reshape if rem==0
        gmin, gmax = _pallas_minmax(x)
        if rem:
            # <128-element ragged tail: reduce with plain jnp (no full-tensor
            # pad/concatenate copy) and fold into the epilogue.
            tail = flat[rows * _LANES:]
            gmin = jnp.minimum(gmin, jnp.min(tail).astype(jnp.float32))
            gmax = jnp.maximum(gmax, jnp.max(tail).astype(jnp.float32))

    lbl = jnp.asarray(label, dtype=jnp.float32).reshape(())
    inc_loss = (gmax - lbl) ** 2
    exc_loss = gmin ** 2
    total = jnp.float32(gamma) * (inc_loss + exc_loss)
    return total, (inc_loss, exc_loss)


def _reference(attention, label, gamma=GAMMA):
    a = attention.astype(jnp.float32)
    inc = (jnp.max(a) - jnp.float32(label)) ** 2
    exc = jnp.min(a) ** 2
    return gamma * (inc + exc), (inc, exc)


if __name__ == "__main__":
    key = jax.random.PRNGKey(0)
    k0, k1 = jax.random.split(key)
    label = 1.0

    # 1) Small demo shape (fast path; typical attention-map size for the module).
    attn_small = jax.random.uniform(k0, (2, 4, 16, 16), dtype=jnp.float32)
    total, (inc, exc) = attention_loss(attn_small, label)
    jax.block_until_ready(total)
    r_total, (r_inc, r_exc) = _reference(attn_small, label)
    assert jnp.allclose(total, r_total, rtol=1e-6, atol=1e-6)
    assert jnp.allclose(inc, r_inc, rtol=1e-6, atol=1e-6)
    assert jnp.allclose(exc, r_exc, rtol=1e-6, atol=1e-6)

    # 2) Ragged shape forced through the Pallas path: non-lane-aligned total
    #    (n % 128 != 0) and a partial last grid block (rows % block_rows != 0).
    attn_ragged = jax.random.uniform(k1, (2, 4, 37, 53), dtype=jnp.float32)
    total, (inc, exc) = attention_loss(attn_ragged, label, min_pallas_elems=0)
    jax.block_until_ready(total)
    r_total, (r_inc, r_exc) = _reference(attn_ragged, label)
    assert jnp.allclose(total, r_total, rtol=1e-6, atol=1e-6)
    assert jnp.allclose(inc, r_inc, rtol=1e-6, atol=1e-6)
    assert jnp.allclose(exc, r_exc, rtol=1e-6, atol=1e-6)

    # 3) bf16 input through the Pallas path (native-dtype min/max, f32 partials).
    attn_bf16 = attn_ragged.astype(jnp.bfloat16)
    total, (inc, exc) = attention_loss(attn_bf16, label, min_pallas_elems=0)
    jax.block_until_ready(total)
    r_total, (r_inc, r_exc) = _reference(attn_bf16, label)
    assert jnp.allclose(total, r_total, rtol=1e-6, atol=1e-6)
    assert jnp.allclose(inc, r_inc, rtol=1e-6, atol=1e-6)
    assert jnp.allclose(exc, r_exc, rtol=1e-6, atol=1e-6)

    print("KERNEL_OK")
</pallas_src>

<mosaic_0001>
module attributes {stable_mosaic.version = 11 : i64} {
  func.func @kernel(%arg0: i32, %arg1: memref<64x128xf32, #tpu.memory_space<vmem>>, %arg2: memref<1x2x8x128xf32, #tpu.memory_space<vmem>>) attributes {dimension_semantics = [#tpu.dimension_semantics<parallel>], iteration_bounds = array<i64: 2>, scalar_prefetch = 0 : i64, scratch_operands = 0 : i64, tpu.core_type = #tpu.core_type<tc>, window_params = [{transform_indices = @transform_0, window_bounds = array<i64: 64, 128>}, {transform_indices = @transform_1, window_bounds = array<i64: 1, 2, 8, 128>}]} {
    %c0 = arith.constant 0 : index
    %c0_0 = arith.constant 0 : index
    %0 = vector.load %arg1[%c0, %c0_0] : memref<64x128xf32, #tpu.memory_space<vmem>>, vector<64x128xf32>
    %c1_i32 = arith.constant 1 : i32
    %1 = arith.cmpi eq, %arg0, %c1_i32 : i32
    %2 = arith.extui %1 : i1 to i32
    %c0_i32 = arith.constant 0 : i32
    %3 = arith.cmpi ne, %2, %c0_i32 : i32
    scf.if %3 {
      %7 = tpu.iota {dimensions = array<i32: 0>} : vector<64x128xi32>
      %c58_i32 = arith.constant 58 : i32
      %8 = vector.broadcast %c58_i32 : i32 to vector<64x128xi32>
      %9 = arith.cmpi slt, %7, %8 : vector<64x128xi32>
      %cst = arith.constant 0x7F800000 : f32
      %10 = vector.broadcast %cst : f32 to vector<64x128xf32>
      %11 = arith.select %9, %0, %10 : vector<64x128xi1>, vector<64x128xf32>
      %cst_3 = arith.constant 0xFF800000 : f32
      %12 = vector.broadcast %cst_3 : f32 to vector<64x128xf32>
      %13 = arith.select %9, %0, %12 : vector<64x128xi1>, vector<64x128xf32>
      %14 = vector.shape_cast %11 : vector<64x128xf32> to vector<8x8x128xf32>
      %cst_4 = arith.constant dense<0x7F800000> : vector<8x128xf32>
      %15 = vector.multi_reduction <minimumf>, %14, %cst_4 [0] : vector<8x8x128xf32> to vector<8x128xf32>
      %16 = vector.shape_cast %13 : vector<64x128xf32> to vector<8x8x128xf32>
      %cst_5 = arith.constant dense<0xFF800000> : vector<8x128xf32>
      %17 = vector.multi_reduction <maximumf>, %16, %cst_5 [0] : vector<8x8x128xf32> to vector<8x128xf32>
      %c0_6 = arith.constant 0 : index
      %c0_7 = arith.constant 0 : index
      %c0_8 = arith.constant 0 : index
      %c0_9 = arith.constant 0 : index
      %18 = vector.load %arg2[%c0_6, %c0_7, %c0_8, %c0_9] : memref<1x2x8x128xf32, #tpu.memory_space<vmem>>, vector<1x1x8x128xf32>
      %19 = vector.shape_cast %18 : vector<1x1x8x128xf32> to vector<8x128xf32>
      %20 = vector.shape_cast %15 : vector<8x128xf32> to vector<1x1x8x128xf32>
      tpu.vector_store %arg2[%c0_6, %c0_7, %c0_8, %c0_9], %20 {strides = array<i32>} : memref<1x2x8x128xf32, #tpu.memory_space<vmem>>, vector<1x1x8x128xf32>,
      %c0_10 = arith.constant 0 : index
      %c1 = arith.constant 1 : index
      %c0_11 = arith.constant 0 : index
      %c0_12 = arith.constant 0 : index
      %21 = vector.load %arg2[%c0_10, %c1, %c0_11, %c0_12] : memref<1x2x8x128xf32, #tpu.memory_space<vmem>>, vector<1x1x8x128xf32>
      %22 = vector.shape_cast %21 : vector<1x1x8x128xf32> to vector<8x128xf32>
      %23 = vector.shape_cast %17 : vector<8x128xf32> to vector<1x1x8x128xf32>
      tpu.vector_store %arg2[%c0_10, %c1, %c0_11, %c0_12], %23 {strides = array<i32>} : memref<1x2x8x128xf32, #tpu.memory_space<vmem>>, vector<1x1x8x128xf32>,
    } else {
    }
    %c1_i32_1 = arith.constant 1 : i32
    %4 = arith.cmpi ne, %arg0, %c1_i32_1 : i32
    %5 = arith.extui %4 : i1 to i32
    %c0_i32_2 = arith.constant 0 : i32
    %6 = arith.cmpi ne, %5, %c0_i32_2 : i32
    scf.if %6 {
      %7 = vector.shape_cast %0 : vector<64x128xf32> to vector<8x8x128xf32>
      %cst = arith.constant dense<0x7F800000> : vector<8x128xf32>
      %8 = vector.multi_reduction <minimumf>, %7, %cst [0] : vector<8x8x128xf32> to vector<8x128xf32>
      %9 = vector.shape_cast %0 : vector<64x128xf32> to vector<8x8x128xf32>
      %cst_3 = arith.constant dense<0xFF800000> : vector<8x128xf32>
      %10 = vector.multi_reduction <maximumf>, %9, %cst_3 [0] : vector<8x8x128xf32> to vector<8x128xf32>
      %c0_4 = arith.constant 0 : index
      %c0_5 = arith.constant 0 : index
      %c0_6 = arith.constant 0 : index
      %c0_7 = arith.constant 0 : index
      %11 = vector.load %arg2[%c0_4, %c0_5, %c0_6, %c0_7] : memref<1x2x8x128xf32, #tpu.memory_space<vmem>>, vector<1x1x8x128xf32>
      %12 = vector.shape_cast %11 : vector<1x1x8x128xf32> to vector<8x128xf32>
      %13 = vector.shape_cast %8 : vector<8x128xf32> to vector<1x1x8x128xf32>
      tpu.vector_store %arg2[%c0_4, %c0_5, %c0_6, %c0_7], %13 {strides = array<i32>} : memref<1x2x8x128xf32, #tpu.memory_space<vmem>>, vector<1x1x8x128xf32>,
      %c0_8 = arith.constant 0 : index
      %c1 = arith.constant 1 : index
      %c0_9 = arith.constant 0 : index
      %c0_10 = arith.constant 0 : index
      %14 = vector.load %arg2[%c0_8, %c1, %c0_9, %c0_10] : memref<1x2x8x128xf32, #tpu.memory_space<vmem>>, vector<1x1x8x128xf32>
      %15 = vector.shape_cast %14 : vector<1x1x8x128xf32> to vector<8x128xf32>
      %16 = vector.shape_cast %10 : vector<8x128xf32> to vector<1x1x8x128xf32>
      tpu.vector_store %arg2[%c0_8, %c1, %c0_9, %c0_10], %16 {strides = array<i32>} : memref<1x2x8x128xf32, #tpu.memory_space<vmem>>, vector<1x1x8x128xf32>,
    } else {
    }
    return
  }
  func.func @transform_0(%arg0: i32) -> (i32, i32) {
    %c0_i32 = arith.constant 0 : i32
    %c0_i32_0 = arith.constant 0 : i32
    return %arg0, %c0_i32 : i32, i32
  }
  func.func @transform_1(%arg0: i32) -> (i32, i32, i32, i32) {
    %c0_i32 = arith.constant 0 : i32
    %c0_i32_0 = arith.constant 0 : i32
    %c0_i32_1 = arith.constant 0 : i32
    %c0_i32_2 = arith.constant 0 : i32
    return %arg0, %c0_i32, %c0_i32_0, %c0_i32_1 : i32, i32, i32, i32
  }
}

</mosaic_0001>

<llo_original>
// kernel: tpu_custom_call.1
$region0: #{tpu_custom_call.1}
  #allocation0 [shape = 'u32[]', space=smem, size = 0x4, offset = 0x4, fixed_abs, tag = 'smem constant byte address 0x4 - core index']
  #allocation1 [shape = 'u32[144,128]{1,0:T(1,128)}', space=vmem, size = 0x12000, scoped, tag = 'internal scratch']
  %s0 = inlined_call_operand.hbm [shape: f32[122,128], index: 0, kind: input, shape index: {}]
  %s1 = inlined_call_operand.hbm [shape: f32[2,2,8,128], index: 1, kind: output, shape index: {}]
  %s2 = sld [smem:[#allocation0]]
  $region49: #{tpu_custom_call.1} parent=0
    _
  %s4 = ssub.s32 1, %s2
  %s5 = scalar_select 0, %s4, %s2
  $region1: #{tpu_custom_call.1} parent=0
    #allocation2 [shape = 'u8[65536]{0}', space=vmem, size = 0x10000, scoped, tag = 'input window, operand 0']
    #allocation3 [shape = 's32[2]{0}', space=sflag, size = 0x8, scoped, tag = 'scoped memory for tpu_custom_call.1']
    #allocation4 [shape = 's32[2]{0}', space=sflag, size = 0x8, scoped, tag = 'scoped memory for tpu_custom_call.1']
    #allocation5 [shape = 'u8[16384]{0}', space=vmem, size = 0x4000, scoped, tag = 'output window, operand 0']
    %6 = vsyncpa [#allocation3], 0
    %s7 = scalar_lea.sflag [#allocation3], 1
    %8 = vsyncpa %s7, 0
    %9 = vsyncpa [#allocation4], 0
    %s10 = scalar_lea.sflag [#allocation4], 1
    %11 = vsyncpa %s10, 0
    loop: start=0, step=1, limit=4
    $region2: #{tpu_custom_call.1} parent=1 // loop_pre_header
      _
    $region3: #{tpu_custom_call.1} parent=1 // loop_header
      %s13 = sphi 0, %s17
      %p14 = scmp.ge.s32.totalorder %s13, 4
      %s23 = sphi 0, %s25
      %s26 = sphi 0, %s23
      %s27 = sphi 0, %s26
      %s43 = sphi 0, %s27
      %s49 = sphi 0, %s51
      %s52 = sphi 0, %s49
      %s53 = sphi 0, %s52
      %s69 = sphi 0, %s53
    $region4: #{tpu_custom_call.1} parent=1 // loop_header_branch
      %16 = sbr.rel (%p14) target = $region8
    $region5: #{tpu_custom_call.1} parent=1 // loop_body
      %s18 = ssub.s32 %s13, 1
      %s19 = ssub.s32 %s13, 2
      %s20 = sadd.s32 %s13, 1
      %s21 = ssub.s32 %s13, %s20
      %p22 = scmp.eq.s32.totalorder %s21, 0
      %s24 = sadd.s32 %s23, 1
      %s25 = scalar_select %p22, %s23, %s24
      %p28 = pneg %p22
      %p29 = scmp.eq.s32.totalorder %s13, 1
      %p30 = por %p28, %p29
      %p31 = scmp.ne.s32.totalorder %s23, %s26
      %p32 = scmp.eq.s32.totalorder %s13, 0
      %p33 = por %p31, %p32
      %p34 = scmp.ne.s32.totalorder %s23, %s26
      %p35 = scmp.eq.s32.totalorder %s18, 1
      %p36 = por %p34, %p35
      %p37 = scmp.ne.s32.totalorder %s26, %s27
      %p38 = scmp.eq.s32.totalorder %s18, 0
      %p39 = por %p37, %p38
      %p40 = scmp.ne.s32.totalorder %s26, %s27
      %p41 = scmp.eq.s32.totalorder %s19, 1
      %p42 = por %p40, %p41
      %p44 = scmp.ne.s32.totalorder %s27, %s43
      %p45 = scmp.eq.s32.totalorder %s19, 0
      %p46 = por %p44, %p45
      %s47 = ssub.s32 %s13, %s20
      %p48 = scmp.eq.s32.totalorder %s47, 0
      %s50 = sadd.s32 %s49, 1
      %s51 = scalar_select %p48, %s49, %s50
      %p54 = pneg %p48
      %p55 = scmp.eq.s32.totalorder %s13, 1
      %p56 = por %p54, %p55
      %p57 = scmp.ne.s32.totalorder %s49, %s52
      %p58 = scmp.eq.s32.totalorder %s13, 0
      %p59 = por %p57, %p58
      %p60 = scmp.ne.s32.totalorder %s49, %s52
      %p61 = scmp.eq.s32.totalorder %s18, 1
      %p62 = por %p60, %p61
      %p63 = scmp.ne.s32.totalorder %s52, %s53
      %p64 = scmp.eq.s32.totalorder %s18, 0
      %p65 = por %p63, %p64
      %p66 = scmp.ne.s32.totalorder %s52, %s53
      %p67 = scmp.eq.s32.totalorder %s19, 1
      %p68 = por %p66, %p67
      %p70 = scmp.ne.s32.totalorder %s53, %s69
      %p71 = scmp.eq.s32.totalorder %s19, 0
      %p72 = por %p70, %p71
      %p73 = scmp.le.s32.totalorder 1, %s13
      %p74 = scmp.lt.s32.totalorder %s13, 3
      %p75 = pnand %p73, %p74
      %p76 = pneg %p75
      // Predicated region
      $region9: #{tpu_custom_call.1} parent=5 // pred_check
        _
      $region10: #{tpu_custom_call.1} parent=5 // pred_check_branch
        %78 = sbr.rel (%p75) target = $region12
      $region11: #{tpu_custom_call.1} parent=5 // pred_region
        %s79 = ssub.s32 %s13, 1
      $region12: #{tpu_custom_call.1} parent=5 // pred_fallthru
        _
      %p80 = scmp.lt.s32.totalorder %s13, 2
      // Predicated region
      $region13: #{tpu_custom_call.1} parent=5 // pred_check
        %p81 = pneg %p80
      $region14: #{tpu_custom_call.1} parent=5 // pred_check_branch
        %83 = sbr.rel (%p81) target = $region16
      $region15: #{tpu_custom_call.1} parent=5 // pred_region
        // Predicated region
        $region17: #{tpu_custom_call.1} parent=15 // pred_check
          %p84 = pneg %p33
        $region18: #{tpu_custom_call.1} parent=15 // pred_check_branch
          %86 = sbr.rel (%p84) target = $region20
        $region19: #{tpu_custom_call.1} parent=15 // pred_region
          %s87 = sand.u32 %s23, 1
          %s88 = scalar_lea.sflag [#allocation3], %s87
          %s89 = sand.u32 %s23, 1
          %s90 = smul.addr %s89, 64
          %s91 = scalar_lea.vmem [#allocation2], %s90
          %s92 = smul.u32 8, %s13
          %s94 = ssub.s32 1024, 1024
          %95 = vsyncadd %s88, %s94
          %s96 = smul.addr %s92, 128
          %s97 = scalar_lea.hbm %s0, %s96
          %s98 = sshll.u32 %s91, 4
          %s99 = int_to_ptr.vmem [resolvable:$true] %s98
          %104 = dma.hbm_to_vmem [thread:$0]  %s97, 1024, %s99, %s88, 128, 128, 8
        $region20: #{tpu_custom_call.1} parent=15 // pred_fallthru
          _
      $region16: #{tpu_custom_call.1} parent=5 // pred_fallthru
        _
      %p105 = scmp.le.s32.totalorder 1, %s13
      %p106 = scmp.lt.s32.totalorder %s13, 3
      %p107 = pnand %p105, %p106
      %p108 = pneg %p107
      // Predicated region
      $region21: #{tpu_custom_call.1} parent=5 // pred_check
        _
      $region22: #{tpu_custom_call.1} parent=5 // pred_check_branch
        %110 = sbr.rel (%p107) target = $region24
      $region23: #{tpu_custom_call.1} parent=5 // pred_region
        %s111 = ssub.s32 %s13, 1
        %s112 = sand.u32 %s26, 1
        %s113 = scalar_lea.sflag [#allocation3], %s112
        %s114 = sand.u32 %s26, 1
        %s115 = smul.addr %s114, 64
        %s116 = scalar_lea.vmem [#allocation2], %s115
        // Predicated region
        $region25: #{tpu_custom_call.1} parent=23 // pred_check
          %p117 = pneg %p39
        $region26: #{tpu_custom_call.1} parent=23 // pred_check_branch
          %119 = sbr.rel (%p117) target = $region28
        $region27: #{tpu_custom_call.1} parent=23 // pred_region
          %120 = dma.done %s113, 1024
        $region28: #{tpu_custom_call.1} parent=23 // pred_fallthru
          _
        %s121 = sand.u32 %s26, 1
        %s122 = scalar_lea.sflag [#allocation3], %s121
        %s123 = sand.u32 %s26, 1
        %s124 = smul.addr %s123, 64
        %s125 = scalar_lea.vmem [#allocation2], %s124
        %p126 = pneg %p39
        %p127 = pneg %p36
        %p128 = pneg %p65
        %p129 = pneg %p62
        %s130 = sand.u32 %s52, 1
        %s131 = scalar_lea.sflag [#allocation4], %s130
        %s132 = sand.u32 %s52, 1
        %s133 = smul.addr %s132, 16
        %s134 = scalar_lea.vmem [#allocation5], %s133
        %s135 = smul.u32 8, %s18
        %v136 = vld [vmem:[%s116] sm:$0xff]
        %v137 = vld [vmem:[%s116 + $0x8] sm:$0xff]
        %v138 = vld [vmem:[%s116 + $0x10] sm:$0xff]
        %v139 = vld [vmem:[%s116 + $0x18] sm:$0xff]
        %v140 = vld [vmem:[%s116 + $0x20] sm:$0xff]
        %v141 = vld [vmem:[%s116 + $0x28] sm:$0xff]
        %v142 = vld [vmem:[%s116 + $0x30] sm:$0xff]
        %v143 = vld [vmem:[%s116 + $0x38] sm:$0xff]
        %p144 = scmp.eq.s32.totalorder %s18, 1
        // Predicated region
        $region29: #{tpu_custom_call.1} parent=23 // pred_check
          %p145 = pneg %p144
        $region30: #{tpu_custom_call.1} parent=23 // pred_check_branch
          %147 = sbr.rel (%p145) target = $region32
        $region31: #{tpu_custom_call.1} parent=23 // pred_region
          %v148 = vlaneseq
          %v149 = vshrl.u32 %v148, 7
          %v150 = vadd.s32 %v149, 8
          %v151 = vadd.s32 %v149, 16
          %v152 = vadd.s32 %v149, 24
          %v153 = vadd.s32 %v149, 32
          %v154 = vadd.s32 %v149, 40
          %v155 = vadd.s32 %v149, 48
          %v156 = vadd.s32 %v149, 56
          %vm157 = vcmp.lt.s32.totalorder %v149, 58
          %vm158 = vcmp.lt.s32.totalorder %v150, 58
          %vm159 = vcmp.lt.s32.totalorder %v151, 58
          %vm160 = vcmp.lt.s32.totalorder %v152, 58
          %vm161 = vcmp.lt.s32.totalorder %v153, 58
          %vm162 = vcmp.lt.s32.totalorder %v154, 58
          %vm163 = vcmp.lt.s32.totalorder %v155, 58
          %vm164 = vcmp.lt.s32.totalorder %v156, 58
          %v165 = vsel %vm157, %v136, inf
          %v166 = vsel %vm158, %v137, inf
          %v167 = vsel %vm159, %v138, inf
          %v168 = vsel %vm160, %v139, inf
          %v169 = vsel %vm161, %v140, inf
          %v170 = vsel %vm162, %v141, inf
          %v171 = vsel %vm163, %v142, inf
          %v172 = vsel %vm164, %v143, inf
          %v173 = vsel %vm157, %v136, -inf
          %v174 = vsel %vm158, %v137, -inf
          %v175 = vsel %vm159, %v138, -inf
          %v176 = vsel %vm160, %v139, -inf
          %v177 = vsel %vm161, %v140, -inf
          %v178 = vsel %vm162, %v141, -inf
          %v179 = vsel %vm163, %v142, -inf
          %v180 = vsel %vm164, %v143, -inf
          %v181 = vmin.f32 %v165, %v169
          %v182 = vmin.f32 %v166, %v170
          %v183 = vmin.f32 %v167, %v171
          %v184 = vmin.f32 %v168, %v172
          %v185 = vmin.f32 %v181, %v182
          %v186 = vmin.f32 %v183, %v184
          %v187 = vmin.f32 %v185, %v186
          %v188 = vmax.f32 %v173, %v177
          %v189 = vmax.f32 %v174, %v178
          %v190 = vmax.f32 %v175, %v179
          %v191 = vmax.f32 %v176, %v180
          %v192 = vmax.f32 %v188, %v189
          %v193 = vmax.f32 %v190, %v191
          %v194 = vmax.f32 %v192, %v193
          %195 = vst [vmem:[%s134] sm:$0xff] %v187
          %s196 = scalar_lea.vmem %s134, 8 [#allocation5]
          %197 = vst [vmem:[%s196] sm:$0xff] %v194
        $region32: #{tpu_custom_call.1} parent=23 // pred_fallthru
          _
        %p198 = scmp.ne.s32.totalorder %s18, 1
        // Predicated region
        $region33: #{tpu_custom_call.1} parent=23 // pred_check
          %p199 = pneg %p198
        $region34: #{tpu_custom_call.1} parent=23 // pred_check_branch
          %201 = sbr.rel (%p199) target = $region36
        $region35: #{tpu_custom_call.1} parent=23 // pred_region
          %v202 = vmin.f32 %v136, %v140
          %v203 = vmin.f32 %v137, %v141
          %v204 = vmin.f32 %v138, %v142
          %v205 = vmin.f32 %v139, %v143
          %v206 = vmin.f32 %v202, %v203
          %v207 = vmin.f32 %v204, %v205
          %v208 = vmin.f32 %v206, %v207
          %v209 = vmax.f32 %v136, %v140
          %v210 = vmax.f32 %v137, %v141
          %v211 = vmax.f32 %v138, %v142
          %v212 = vmax.f32 %v139, %v143
          %v213 = vmax.f32 %v209, %v210
          %v214 = vmax.f32 %v211, %v212
          %v215 = vmax.f32 %v213, %v214
          %216 = vst [vmem:[%s134] sm:$0xff] %v208
          %s217 = scalar_lea.vmem %s134, 8 [#allocation5]
          %218 = vst [vmem:[%s217] sm:$0xff] %v215
        $region36: #{tpu_custom_call.1} parent=23 // pred_fallthru
          _
        %s219 = sand.u32 %s52, 1
        %s220 = scalar_lea.sflag [#allocation4], %s219
        %s221 = sand.u32 %s52, 1
        %s222 = smul.addr %s221, 16
        %s223 = scalar_lea.vmem [#allocation5], %s222
        // Predicated region
        $region37: #{tpu_custom_call.1} parent=23 // pred_check
          %p224 = pneg %p62
        $region38: #{tpu_custom_call.1} parent=23 // pred_check_branch
          %226 = sbr.rel (%p224) target = $region40
        $region39: #{tpu_custom_call.1} parent=23 // pred_region
          %s228 = ssub.s32 256, 256
          %229 = vsyncadd %s220, %s228
          %s230 = smul.addr %s18, 2
          %s231 = smul.addr %s230, 128
          %s232 = scalar_lea.hbm %s1, %s231
          %s233 = sshll.u32 %s223, 4
          %s234 = int_to_ptr.vmem [resolvable:$true] %s233
          %239 = dma.vmem_to_hbm [thread:$0]  %s234, 256, %s232, %s220, 128, 128, 8
        $region40: #{tpu_custom_call.1} parent=23 // pred_fallthru
          _
      $region24: #{tpu_custom_call.1} parent=5 // pred_fallthru
        _
      %p240 = scmp.le.s32.totalorder 2, %s13
      // Predicated region
      $region41: #{tpu_custom_call.1} parent=5 // pred_check
        %p241 = pneg %p240
      $region42: #{tpu_custom_call.1} parent=5 // pred_check_branch
        %243 = sbr.rel (%p241) target = $region44
      $region43: #{tpu_custom_call.1} parent=5 // pred_region
        %s244 = ssub.s32 %s13, 2
        // Predicated region
        $region45: #{tpu_custom_call.1} parent=43 // pred_check
          %p245 = pneg %p68
        $region46: #{tpu_custom_call.1} parent=43 // pred_check_branch
          %247 = sbr.rel (%p245) target = $region48
        $region47: #{tpu_custom_call.1} parent=43 // pred_region
          %s248 = sand.u32 %s53, 1
          %s249 = scalar_lea.sflag [#allocation4], %s248
          %s250 = sand.u32 %s53, 1
          %s251 = smul.addr %s250, 16
          %s252 = scalar_lea.vmem [#allocation5], %s251
          %253 = dma.done %s249, 256
        $region48: #{tpu_custom_call.1} parent=43 // pred_fallthru
          _
      $region44: #{tpu_custom_call.1} parent=5 // pred_fallthru
        _
    $region6: #{tpu_custom_call.1} parent=1 // loop_footer
      %s17 = sadd.s32 1, %s13
    $region7: #{tpu_custom_call.1} parent=1 // loop_footer_branch
      %12 = sbr.rel target = $region3
    $region8: #{tpu_custom_call.1} parent=1 // loop_exit
      _
    %254 = vsyncpa [#allocation3], 1
    %s255 = scalar_lea.sflag [#allocation3], 1
    %256 = vsyncpa %s255, 1
    %257 = vsyncpa [#allocation4], 1
    %s258 = scalar_lea.sflag [#allocation4], 1
    %259 = vsyncpa %s258, 1

</llo_original>
